<compile_context>
chip_gen: v5e
topology: v5e:2x2
jax: 0.10.0
libtpu: 0.0.40
codegen_flags: <defaults>
</compile_context>

<pallas_src>
import jax
import jax.numpy as jnp
from jax.experimental import pallas as pl
from jax.experimental.pallas import tpu as pltpu


def _round_up(x, m):
    return (x + m - 1) // m * m


def conv1x1_gelu_kernel(x_ref, w_ref, b_ref, o_ref):
    # x_ref : (1, Cin, T)   NCHW-flattened input tile (H*W on lanes)
    # w_ref : (Cout, Cin)   resident weight (PyTorch Conv2d 1x1: out x in)
    # b_ref : (Cout, 1)     resident bias
    # o_ref : (1, Cout, T)
    x = x_ref[0]          # (Cin, T)
    w = w_ref[...]        # (Cout, Cin)
    b = b_ref[...]        # (Cout, 1)

    # 1x1 conv in NCHW layout: channels contract on the MXU, H*W stays on lanes.
    v1 = jnp.dot(w, x, preferred_element_type=jnp.float32) + b

    # Fused tanh-GELU-style epilogue (folded form of the PyTorch op sequence):
    #   v1 + 0.5*v1*(1 + tanh(c*(v1 + 0.044715*v1^3)))
    #     == v1 * (1.5 + 0.5*tanh(c*(v1 + 0.044715*v1*v1*v1)))
    u = (v1 + 0.044715 * (v1 * v1 * v1)) * 0.7978845608028654
    out = v1 * (1.5 + 0.5 * jnp.tanh(u))

    o_ref[0] = out.astype(o_ref.dtype)


def conv1x1_gelu_nchw(x, w, b, *, t_hw=2048):
    """x: (N, Cin, H, W), w: (Cout, Cin) PyTorch-style, b: (Cout,).
    Returns (N, Cout, H, W)."""
    N, Cin, H, W = x.shape
    Cout = w.shape[0]
    HW = H * W

    # Spatial tile: a multiple of 128 lanes (lane-dense stores on full tiles);
    # the edge tile is masked by Pallas via the cdiv grid — no host-side pad or
    # slice of the activations/outputs.  Elementwise-only epilogue means garbage
    # lanes in the masked edge tile never feed valid outputs.
    T = min(t_hw, _round_up(HW, 128))
    grid = (N, pl.cdiv(HW, T))

    x3 = x.reshape(N, Cin, HW)
    b2 = b.reshape(Cout, 1)

    out = pl.pallas_call(
        conv1x1_gelu_kernel,
        out_shape=jax.ShapeDtypeStruct((N, Cout, HW), x.dtype),
        grid_spec=pltpu.PrefetchScalarGridSpec(
            num_scalar_prefetch=0,
            grid=grid,
            in_specs=[
                # Block dims equal full array extents on the channel axes
                # (OK per the (8,128) rule); only T needs the 128 multiple.
                pl.BlockSpec((1, Cin, T), lambda n, j: (n, 0, j)),
                pl.BlockSpec((Cout, Cin), lambda n, j: (0, 0)),
                pl.BlockSpec((Cout, 1), lambda n, j: (0, 0)),
            ],
            out_specs=pl.BlockSpec((1, Cout, T), lambda n, j: (n, 0, j)),
        ),
        compiler_params=pltpu.CompilerParams(
            dimension_semantics=("parallel", "parallel"),
        ),
    )(x3, w, b2)

    return out.reshape(N, Cout, H, W)


def model_forward(x_nchw, w, b):
    """x_nchw: (N, C, H, W) float32. Returns (N, C, H, W)."""
    return conv1x1_gelu_nchw(x_nchw, w, b, t_hw=2048)


def reference_forward(x_nchw, w, b):
    """Pure-JAX reference matching the PyTorch module semantics op-for-op."""
    v1 = jnp.einsum("oc,nchw->nohw", w, x_nchw) + b[None, :, None, None]
    v2 = v1 * 0.5
    v5 = (v1 * v1 * v1) * 0.044715
    v7 = (v1 + v5) * 0.7978845608028654
    return v1 + v2 * (jnp.tanh(v7) + 1.0)


if __name__ == "__main__":
    # Small shapes consistent with the module (original: N=1, C=100, H=W=100).
    # C=100 exercises the non-128-divisible channel path; HW exercises the
    # lane-tile edge handling.
    N, C, H, W = 2, 100, 16, 16

    key = jax.random.PRNGKey(0)
    kx, kw, kb = jax.random.split(key, 3)

    x = jax.random.normal(kx, (N, C, H, W), dtype=jnp.float32)
    # Deterministic Conv2d(100, 100, 1) parameters (synthetic, PyTorch-style shapes).
    w = jax.random.normal(kw, (C, C), dtype=jnp.float32) * 0.05   # (Cout, Cin)
    b = jax.random.normal(kb, (C,), dtype=jnp.float32) * 0.05

    out = model_forward(x, w, b)
    out = jax.block_until_ready(out)

    ref = reference_forward(x, w, b)
    assert out.shape == (N, C, H, W)
    assert jnp.allclose(out, ref, atol=2e-4, rtol=2e-4), "mismatch vs reference"

    print("KERNEL_OK")
</pallas_src>

<mosaic_0001>
module attributes {stable_mosaic.version = 11 : i64} {
  func.func @conv1x1_gelu_kernel(%arg0: i32, %arg1: i32, %arg2: memref<1x100x256xf32, #tpu.memory_space<vmem>>, %arg3: memref<100x100xf32, #tpu.memory_space<vmem>>, %arg4: memref<100x1xf32, #tpu.memory_space<vmem>>, %arg5: memref<1x100x256xf32, #tpu.memory_space<vmem>>) attributes {dimension_semantics = [#tpu.dimension_semantics<parallel>, #tpu.dimension_semantics<parallel>], iteration_bounds = array<i64: 2, 1>, scalar_prefetch = 0 : i64, scratch_operands = 0 : i64, tpu.core_type = #tpu.core_type<tc>, window_params = [{transform_indices = @transform_0, window_bounds = array<i64: 1, 100, 256>}, {pipeline_mode = #tpu.pipeline_mode<synchronous>, transform_indices = @transform_1, window_bounds = array<i64: 100, 100>}, {pipeline_mode = #tpu.pipeline_mode<synchronous>, transform_indices = @transform_2, window_bounds = array<i64: 100, 1>}, {transform_indices = @transform_3, window_bounds = array<i64: 1, 100, 256>}]} {
    %c0 = arith.constant 0 : index
    %c0_0 = arith.constant 0 : index
    %c0_1 = arith.constant 0 : index
    %0 = vector.load %arg2[%c0, %c0_0, %c0_1] : memref<1x100x256xf32, #tpu.memory_space<vmem>>, vector<1x100x256xf32>
    %1 = vector.shape_cast %0 : vector<1x100x256xf32> to vector<100x256xf32>
    %c0_2 = arith.constant 0 : index
    %c0_3 = arith.constant 0 : index
    %2 = vector.load %arg3[%c0_2, %c0_3] : memref<100x100xf32, #tpu.memory_space<vmem>>, vector<100x100xf32>
    %c0_4 = arith.constant 0 : index
    %c0_5 = arith.constant 0 : index
    %3 = vector.load %arg4[%c0_4, %c0_5] : memref<100x1xf32, #tpu.memory_space<vmem>>, vector<100x1xf32>
    %cst = arith.constant dense<0.000000e+00> : vector<100x256xf32>
    %4 = tpu.matmul %2, %1, %cst {dimension_numbers = #tpu.dot_dimension_numbers<[1], [0], [0], [1], [0, 0, 1, 1], [], []>} : vector<100x100xf32>, vector<100x256xf32>, vector<100x256xf32> -> vector<100x256xf32>
    %5 = vector.broadcast %3 : vector<100x1xf32> to vector<100x256xf32>
    %6 = arith.addf %4, %5 : vector<100x256xf32>
    %7 = arith.mulf %6, %6 : vector<100x256xf32>
    %8 = arith.mulf %7, %6 : vector<100x256xf32>
    %cst_6 = arith.constant 4.471500e-02 : f32
    %9 = vector.broadcast %cst_6 : f32 to vector<100x256xf32>
    %10 = arith.mulf %9, %8 : vector<100x256xf32>
    %11 = arith.addf %6, %10 : vector<100x256xf32>
    %cst_7 = arith.constant 0.797884583 : f32
    %12 = vector.broadcast %cst_7 : f32 to vector<100x256xf32>
    %13 = arith.mulf %11, %12 : vector<100x256xf32>
    %14 = math.tanh %13 : vector<100x256xf32>
    %cst_8 = arith.constant 5.000000e-01 : f32
    %15 = vector.broadcast %cst_8 : f32 to vector<100x256xf32>
    %16 = arith.mulf %15, %14 : vector<100x256xf32>
    %cst_9 = arith.constant 1.500000e+00 : f32
    %17 = vector.broadcast %cst_9 : f32 to vector<100x256xf32>
    %18 = arith.addf %17, %16 : vector<100x256xf32>
    %19 = arith.mulf %6, %18 : vector<100x256xf32>
    %c0_10 = arith.constant 0 : index
    %c0_11 = arith.constant 0 : index
    %c0_12 = arith.constant 0 : index
    %20 = vector.load %arg5[%c0_10, %c0_11, %c0_12] : memref<1x100x256xf32, #tpu.memory_space<vmem>>, vector<1x100x256xf32>
    %21 = vector.shape_cast %20 : vector<1x100x256xf32> to vector<100x256xf32>
    %22 = vector.shape_cast %19 : vector<100x256xf32> to vector<1x100x256xf32>
    tpu.vector_store %arg5[%c0_10, %c0_11, %c0_12], %22 {strides = array<i32>} : memref<1x100x256xf32, #tpu.memory_space<vmem>>, vector<1x100x256xf32>,
    return
  }
  func.func @transform_0(%arg0: i32, %arg1: i32) -> (i32, i32, i32) {
    %c0_i32 = arith.constant 0 : i32
    %c0_i32_0 = arith.constant 0 : i32
    return %arg0, %c0_i32, %arg1 : i32, i32, i32
  }
  func.func @transform_1(%arg0: i32, %arg1: i32) -> (i32, i32) {
    %c0_i32 = arith.constant 0 : i32
    %c0_i32_0 = arith.constant 0 : i32
    %c0_i32_1 = arith.constant 0 : i32
    return %c0_i32, %c0_i32_0 : i32, i32
  }
  func.func @transform_2(%arg0: i32, %arg1: i32) -> (i32, i32) {
    %c0_i32 = arith.constant 0 : i32
    %c0_i32_0 = arith.constant 0 : i32
    %c0_i32_1 = arith.constant 0 : i32
    return %c0_i32, %c0_i32_0 : i32, i32
  }
  func.func @transform_3(%arg0: i32, %arg1: i32) -> (i32, i32, i32) {
    %c0_i32 = arith.constant 0 : i32
    %c0_i32_0 = arith.constant 0 : i32
    return %arg0, %c0_i32, %arg1 : i32, i32, i32
  }
}

</mosaic_0001>

<llo_original>
// kernel: tpu_custom_call.1
$region0: #{tpu_custom_call.1}
  #allocation0 [shape = 'u32[]', space=smem, size = 0x4, offset = 0x4, fixed_abs, tag = 'smem constant byte address 0x4 - core index']
  #allocation1 [shape = 'u32[72,128]{1,0:T(1,128)}', space=vmem, size = 0x9000, scoped, tag = 'internal scratch']
  %s0 = inlined_call_operand.vmem [shape: f32[2,100,256], index: 0, kind: input, shape index: {}]
  %s1 = inlined_call_operand.vmem [shape: f32[100,100], index: 1, kind: input, shape index: {}]
  %s2 = inlined_call_operand.vmem [shape: f32[100,1], index: 2, kind: input, shape index: {}]
  %s3 = inlined_call_operand.vmem [shape: f32[2,100,256], index: 3, kind: output, shape index: {}]
  %s4 = sld [smem:[#allocation0]]
  $region45: #{tpu_custom_call.1} parent=0
    _
  %s6 = ssub.s32 1, %s4
  %s7 = scalar_select 0, %s6, %s4
  loop: start=0, step=1, limit=4
  $region2: #{tpu_custom_call.1} parent=0 // loop_pre_header
    _
  $region3: #{tpu_custom_call.1} parent=0 // loop_header
    %s9 = sphi 0, %s13
    %p10 = scmp.ge.s32.totalorder %s9, 4
    %s16 = sphi 0, %s28
    %s17 = sphi 0, %s24
    %s18 = sphi 0, %s16
    %s19 = sphi 0, %s17
    %s20 = sphi 0, %s18
    %s21 = sphi 0, %s19
    %s33 = sphi 0, %s35
    %s36 = sphi 0, %s33
    %s37 = sphi 0, %s36
    %s53 = sphi 0, %s37
    %s57 = sphi 0, %s57
    %s59 = sphi 0, %s57
    %s60 = sphi 0, %s59
    %s74 = sphi 0, %s60
    %s78 = sphi 0, %s78
    %s80 = sphi 0, %s78
    %s81 = sphi 0, %s80
    %s95 = sphi 0, %s81
    %s103 = sphi 0, %s105
    %s106 = sphi 0, %s103
    %s107 = sphi 0, %s106
    %s123 = sphi 0, %s107
  $region4: #{tpu_custom_call.1} parent=0 // loop_header_branch
    %12 = sbr.rel (%p10) target = $region8
  $region5: #{tpu_custom_call.1} parent=0 // loop_body
    %s14 = ssub.s32 %s9, 1
    %s15 = ssub.s32 %s9, 2
    %s22 = sadd.s32 1, %s17
    %p23 = scmp.ge.s32.totalorder %s22, 1
    %s24 = scalar_select %p23, 0, %s22
    %s25 = sadd.s32 1, %s16
    %s26 = scalar_select %p23, %s25, %s16
    %p27 = scmp.ge.s32.totalorder %s26, 2
    %s28 = scalar_select %p27, 0, %s26
    %s29 = ssub.s32 %s16, %s28
    %s30 = ssub.s32 %s17, %s24
    %s31 = sor.u32 %s29, %s30
    %p32 = scmp.eq.s32.totalorder %s31, 0
    %s34 = sadd.s32 %s33, 1
    %s35 = scalar_select %p32, %s33, %s34
    %p38 = pneg %p32
    %p39 = scmp.eq.s32.totalorder %s9, 1
    %p40 = por %p38, %p39
    %p41 = scmp.ne.s32.totalorder %s33, %s36
    %p42 = scmp.eq.s32.totalorder %s9, 0
    %p43 = por %p41, %p42
    %p44 = scmp.ne.s32.totalorder %s33, %s36
    %p45 = scmp.eq.s32.totalorder %s14, 1
    %p46 = por %p44, %p45
    %p47 = scmp.ne.s32.totalorder %s36, %s37
    %p48 = scmp.eq.s32.totalorder %s14, 0
    %p49 = por %p47, %p48
    %p50 = scmp.ne.s32.totalorder %s36, %s37
    %p51 = scmp.eq.s32.totalorder %s15, 1
    %p52 = por %p50, %p51
    %p54 = scmp.ne.s32.totalorder %s37, %s53
    %p55 = scmp.eq.s32.totalorder %s15, 0
    %p56 = por %p54, %p55
    %s58 = sadd.s32 %s57, 1
    %p61 = scmp.eq.s32.totalorder %s9, 1
    %p62 = scmp.ne.s32.totalorder %s57, %s59
    %p63 = scmp.eq.s32.totalorder %s9, 0
    %p64 = por %p62, %p63
    %p65 = scmp.ne.s32.totalorder %s57, %s59
    %p66 = scmp.eq.s32.totalorder %s14, 1
    %p67 = por %p65, %p66
    %p68 = scmp.ne.s32.totalorder %s59, %s60
    %p69 = scmp.eq.s32.totalorder %s14, 0
    %p70 = por %p68, %p69
    %p71 = scmp.ne.s32.totalorder %s59, %s60
    %p72 = scmp.eq.s32.totalorder %s15, 1
    %p73 = por %p71, %p72
    %p75 = scmp.ne.s32.totalorder %s60, %s74
    %p76 = scmp.eq.s32.totalorder %s15, 0
    %p77 = por %p75, %p76
    %s79 = sadd.s32 %s78, 1
    %p82 = scmp.eq.s32.totalorder %s9, 1
    %p83 = scmp.ne.s32.totalorder %s78, %s80
    %p84 = scmp.eq.s32.totalorder %s9, 0
    %p85 = por %p83, %p84
    %p86 = scmp.ne.s32.totalorder %s78, %s80
    %p87 = scmp.eq.s32.totalorder %s14, 1
    %p88 = por %p86, %p87
    %p89 = scmp.ne.s32.totalorder %s80, %s81
    %p90 = scmp.eq.s32.totalorder %s14, 0
    %p91 = por %p89, %p90
    %p92 = scmp.ne.s32.totalorder %s80, %s81
    %p93 = scmp.eq.s32.totalorder %s15, 1
    %p94 = por %p92, %p93
    %p96 = scmp.ne.s32.totalorder %s81, %s95
    %p97 = scmp.eq.s32.totalorder %s15, 0
    %p98 = por %p96, %p97
    %s99 = ssub.s32 %s16, %s28
    %s100 = ssub.s32 %s17, %s24
    %s101 = sor.u32 %s99, %s100
    %p102 = scmp.eq.s32.totalorder %s101, 0
    %s104 = sadd.s32 %s103, 1
    %s105 = scalar_select %p102, %s103, %s104
    %p108 = pneg %p102
    %p109 = scmp.eq.s32.totalorder %s9, 1
    %p110 = por %p108, %p109
    %p111 = scmp.ne.s32.totalorder %s103, %s106
    %p112 = scmp.eq.s32.totalorder %s9, 0
    %p113 = por %p111, %p112
    %p114 = scmp.ne.s32.totalorder %s103, %s106
    %p115 = scmp.eq.s32.totalorder %s14, 1
    %p116 = por %p114, %p115
    %p117 = scmp.ne.s32.totalorder %s106, %s107
    %p118 = scmp.eq.s32.totalorder %s14, 0
    %p119 = por %p117, %p118
    %p120 = scmp.ne.s32.totalorder %s106, %s107
    %p121 = scmp.eq.s32.totalorder %s15, 1
    %p122 = por %p120, %p121
    %p124 = scmp.ne.s32.totalorder %s107, %s123
    %p125 = scmp.eq.s32.totalorder %s15, 0
    %p126 = por %p124, %p125
    %p127 = scmp.le.s32.totalorder 1, %s9
    %p128 = scmp.lt.s32.totalorder %s9, 3
    %p129 = pnand %p127, %p128
    %p130 = pneg %p129
    // Predicated region
    $region9: #{tpu_custom_call.1} parent=5 // pred_check
      _
    $region10: #{tpu_custom_call.1} parent=5 // pred_check_branch
      %132 = sbr.rel (%p129) target = $region12
    $region11: #{tpu_custom_call.1} parent=5 // pred_region
      %s133 = ssub.s32 %s9, 1
      // Predicated region
      $region13: #{tpu_custom_call.1} parent=11 // pred_check
        %p134 = pneg %p70
      $region14: #{tpu_custom_call.1} parent=11 // pred_check_branch
        %136 = sbr.rel (%p134) target = $region16
      $region15: #{tpu_custom_call.1} parent=11 // pred_region
        _
      $region16: #{tpu_custom_call.1} parent=11 // pred_fallthru
        _
      // Predicated region
      $region17: #{tpu_custom_call.1} parent=11 // pred_check
        %p137 = pneg %p91
      $region18: #{tpu_custom_call.1} parent=11 // pred_check_branch
        %139 = sbr.rel (%p137) target = $region20
      $region19: #{tpu_custom_call.1} parent=11 // pred_region
        _
      $region20: #{tpu_custom_call.1} parent=11 // pred_fallthru
        _
    $region12: #{tpu_custom_call.1} parent=5 // pred_fallthru
      _
    %p140 = scmp.lt.s32.totalorder %s9, 2
    // Predicated region
    $region21: #{tpu_custom_call.1} parent=5 // pred_check
      %p141 = pneg %p140
    $region22: #{tpu_custom_call.1} parent=5 // pred_check_branch
      %143 = sbr.rel (%p141) target = $region24
    $region23: #{tpu_custom_call.1} parent=5 // pred_region
      // Predicated region
      $region25: #{tpu_custom_call.1} parent=23 // pred_check
        %p144 = pneg %p43
      $region26: #{tpu_custom_call.1} parent=23 // pred_check_branch
        %146 = sbr.rel (%p144) target = $region28
      $region27: #{tpu_custom_call.1} parent=23 // pred_region
        %s147 = smul.u32 2, %s17
        %p148 = scmp.lt.s32.totalorder %s16, 1
        %s149 = scalar_select %p148, %s16, 1
        %p150 = scmp.lt.s32.totalorder %s147, 1
        %s151 = scalar_select %p150, %s147, 1
        %s152 = smul.addr %s149, 26
        %s153 = sadd.s32 %s151, %s152
        %s154 = smul.addr %s153, 8
        %s155 = scalar_lea.vmem %s0, %s154
        %s156 = smul.u32 2, %s17
      $region28: #{tpu_custom_call.1} parent=23 // pred_fallthru
        _
    $region24: #{tpu_custom_call.1} parent=5 // pred_fallthru
      _
    %p157 = scmp.le.s32.totalorder 1, %s9
    %p158 = scmp.lt.s32.totalorder %s9, 3
    %p159 = pnand %p157, %p158
    %p160 = pneg %p159
    // Predicated region
    $region29: #{tpu_custom_call.1} parent=5 // pred_check
      _
    $region30: #{tpu_custom_call.1} parent=5 // pred_check_branch
      %162 = sbr.rel (%p159) target = $region32
    $region31: #{tpu_custom_call.1} parent=5 // pred_region
      %s163 = ssub.s32 %s9, 1
      %s164 = smul.u32 2, %s19
      %p165 = scmp.lt.s32.totalorder %s18, 1
      %s166 = scalar_select %p165, %s18, 1
      %p167 = scmp.lt.s32.totalorder %s164, 1
      %s168 = scalar_select %p167, %s164, 1
      %s169 = smul.addr %s166, 26
      %s170 = sadd.s32 %s168, %s169
      %s171 = smul.addr %s170, 8
      %s172 = scalar_lea.vmem %s0, %s171
      %p173 = pneg %p49
      %p174 = pneg %p46
      %p175 = pneg %p70
      %p176 = pneg %p67
      %p177 = pneg %p91
      %p178 = pneg %p88
      %p179 = pneg %p119
      %p180 = pneg %p116
      %s181 = smul.u32 2, %s19
      %p182 = scmp.lt.s32.totalorder %s18, 1
      %s183 = scalar_select %p182, %s18, 1
      %p184 = scmp.lt.s32.totalorder %s181, 1
      %s185 = scalar_select %p184, %s181, 1
      %s186 = smul.addr %s183, 26
      %s187 = sadd.s32 %s185, %s186
      %s188 = smul.addr %s187, 8
      %s189 = scalar_lea.vmem %s3, %s188
      %s190 = smul.u32 2, %s19
      %p191 = scmp.lt.s32.totalorder %s18, 1
      %s192 = scalar_select %p191, %s18, 1
      %p193 = scmp.lt.s32.totalorder %s190, 1
      %s194 = scalar_select %p193, %s190, 1
      %s195 = smul.addr %s192, 26
      %s196 = sadd.s32 %s194, %s195
      %s197 = smul.addr %s196, 8
      %s198 = scalar_lea.vmem %s0, %s197
      %s199 = smul.u32 2, %s19
      %s200 = smul.u32 2, %s19
      %p201 = scmp.lt.s32.totalorder %s18, 1
      %s202 = scalar_select %p201, %s18, 1
      %p203 = scmp.lt.s32.totalorder %s200, 1
      %s204 = scalar_select %p203, %s200, 1
      %s205 = smul.addr %s202, 26
      %s206 = sadd.s32 %s204, %s205
      %s207 = smul.addr %s206, 8
      %s208 = scalar_lea.vmem %s3, %s207
      %s209 = smul.u32 2, %s19
      %v210 = vld [vmem:[%s198] sm:$0xff]
      %v211 = vld [vmem:[%s198 + $0x8] sm:$0xff]
      %v212 = vld [vmem:[%s198 + $0x10] sm:$0xff]
      %v213 = vld [vmem:[%s198 + $0x18] sm:$0xff]
      %v214 = vld [vmem:[%s198 + $0x20] sm:$0xff]
      %v215 = vld [vmem:[%s198 + $0x28] sm:$0xff]
      %v216 = vld [vmem:[%s198 + $0x30] sm:$0xff]
      %v217 = vld [vmem:[%s198 + $0x38] sm:$0xff]
      %v218 = vld [vmem:[%s198 + $0x40] sm:$0xff]
      %v219 = vld [vmem:[%s198 + $0x48] sm:$0xff]
      %v220 = vld [vmem:[%s198 + $0x50] sm:$0xff]
      %v221 = vld [vmem:[%s198 + $0x58] sm:$0xff]
      %v222 = vld [vmem:[%s198 + $0x60] sm:$0xff]
      %v223 = vld [vmem:[%s198 + $0x68] sm:$0xff]
      %v224 = vld [vmem:[%s198 + $0x70] sm:$0xff]
      %v225 = vld [vmem:[%s198 + $0x78] sm:$0xff]
      %v226 = vld [vmem:[%s198 + $0x80] sm:$0xff]
      %v227 = vld [vmem:[%s198 + $0x88] sm:$0xff]
      %v228 = vld [vmem:[%s198 + $0x90] sm:$0xff]
      %v229 = vld [vmem:[%s198 + $0x98] sm:$0xff]
      %v230 = vld [vmem:[%s198 + $0xa0] sm:$0xff]
      %v231 = vld [vmem:[%s198 + $0xa8] sm:$0xff]
      %v232 = vld [vmem:[%s198 + $0xb0] sm:$0xff]
      %v233 = vld [vmem:[%s198 + $0xb8] sm:$0xff]
      %v234 = vld [vmem:[%s198 + $0xc0] sm:$0xf]
      %v235 = vld [vmem:[%s198 + $0xc8] sm:$0xf]
      %v236 = vld [vmem:[%s1] sm:$0xff]
      %v237 = vld [vmem:[%s1 + $0x8] sm:$0xff]
      %v238 = vld [vmem:[%s1 + $0x10] sm:$0xff]
      %v239 = vld [vmem:[%s1 + $0x18] sm:$0xff]
      %v240 = vld [vmem:[%s1 + $0x20] sm:$0xff]
      %v241 = vld [vmem:[%s1 + $0x28] sm:$0xff]
      %v242 = vld [vmem:[%s1 + $0x30] sm:$0xff]
      %v243 = vld [vmem:[%s1 + $0x38] sm:$0xff]
      %v244 = vld [vmem:[%s1 + $0x40] sm:$0xff]
      %v245 = vld [vmem:[%s1 + $0x48] sm:$0xff]
      %v246 = vld [vmem:[%s1 + $0x50] sm:$0xff]
      %v247 = vld [vmem:[%s1 + $0x58] sm:$0xff]
      %v248 = vld [vmem:[%s1 + $0x60] sm:$0xf]
      %v249 = vld [vmem:[%s2] sm:$0xff]
      %v250 = vld [vmem:[%s2 + $0x8] sm:$0xff]
      %v251 = vld [vmem:[%s2 + $0x10] sm:$0xff]
      %v252 = vld [vmem:[%s2 + $0x18] sm:$0xff]
      %v253 = vld [vmem:[%s2 + $0x20] sm:$0xff]
      %v254 = vld [vmem:[%s2 + $0x28] sm:$0xff]
      %v255 = vld [vmem:[%s2 + $0x30] sm:$0xff]
      %v256 = vld [vmem:[%s2 + $0x38] sm:$0xff]
      %v257 = vld [vmem:[%s2 + $0x40] sm:$0xff]
      %v258 = vld [vmem:[%s2 + $0x48] sm:$0xff]
      %v259 = vld [vmem:[%s2 + $0x50] sm:$0xff]
      %v260 = vld [vmem:[%s2 + $0x58] sm:$0xff]
      %v261 = vld [vmem:[%s2 + $0x60] sm:$0xf]
      %263 = vset.pattern.permute.xlu0 0
      %264 = vperm.xlu0 %263, %v249
      %v265 = vpop.permute.xlu0 %264
      %268 = vset.pattern.permute.xlu0 0
      %269 = vperm.xlu0 %268, %v250
      %v270 = vpop.permute.xlu0 %269
      %273 = vset.pattern.permute.xlu0 0
      %274 = vperm.xlu0 %273, %v251
      %v275 = vpop.permute.xlu0 %274
      %278 = vset.pattern.permute.xlu0 0
      %279 = vperm.xlu0 %278, %v252
      %v280 = vpop.permute.xlu0 %279
      %283 = vset.pattern.permute.xlu0 0
      %284 = vperm.xlu0 %283, %v253
      %v285 = vpop.permute.xlu0 %284
      %288 = vset.pattern.permute.xlu0 0
      %289 = vperm.xlu0 %288, %v254
      %v290 = vpop.permute.xlu0 %289
      %293 = vset.pattern.permute.xlu0 0
      %294 = vperm.xlu0 %293, %v255
      %v295 = vpop.permute.xlu0 %294
      %298 = vset.pattern.permute.xlu0 0
      %299 = vperm.xlu0 %298, %v256
      %v300 = vpop.permute.xlu0 %299
      %303 = vset.pattern.permute.xlu0 0
      %304 = vperm.xlu0 %303, %v257
      %v305 = vpop.permute.xlu0 %304
      %308 = vset.pattern.permute.xlu0 0
      %309 = vperm.xlu0 %308, %v258
      %v310 = vpop.permute.xlu0 %309
      %313 = vset.pattern.permute.xlu0 0
      %314 = vperm.xlu0 %313, %v259
      %v315 = vpop.permute.xlu0 %314
      %318 = vset.pattern.permute.xlu0 0
      %319 = vperm.xlu0 %318, %v260
      %v320 = vpop.permute.xlu0 %319
      %323 = vset.pattern.permute.xlu0 0
      %324 = vperm.xlu0 %323, %v261
      %v325 = vpop.permute.xlu0 %324
      %vm327 = vcmask 818176
      %v329 = vsel %vm327, %v236, 0
      %v332 = vsel %vm327, %v237, 0
      %v335 = vsel %vm327, %v238, 0
      %v338 = vsel %vm327, %v239, 0
      %v341 = vsel %vm327, %v240, 0
      %v344 = vsel %vm327, %v241, 0
      %v347 = vsel %vm327, %v242, 0
      %v350 = vsel %vm327, %v243, 0
      %v353 = vsel %vm327, %v244, 0
      %v356 = vsel %vm327, %v245, 0
      %v359 = vsel %vm327, %v246, 0
      %v362 = vsel %vm327, %v247, 0
      %v365 = vsel %vm327, %v248, 0
      %vm367 = vcmask 1043456
      %v369 = vsel %vm367, %v234, 0
      %v372 = vsel %vm367, %v235, 0
      %374 = vmatpush.msra.mxu0 0.0
      %375 = vmatpush.msra.mxu0 0.0
      %376 = vmatpush.msra.mxu0 0.0
      %377 = vmatpush.msra.mxu0 %v369
      %378 = vmatpush.msra.mxu0 %v232
      %379 = vmatpush.msra.mxu0 %v230
      %380 = vmatpush.msra.mxu0 %v228
      %381 = vmatpush.msra.mxu0 %v226
      %382 = vmatpush.msra.mxu0 %v224
      %383 = vmatpush.msra.mxu0 %v222
      %384 = vmatpush.msra.mxu0 %v220
      %385 = vmatpush.msra.mxu0 %v218
      %386 = vmatpush.msra.mxu0 %v216
      %387 = vmatpush.msra.mxu0 %v214
      %388 = vmatpush.msra.mxu0 %v212
      %389 = vmatpush.msra.mxu0 %v210
      %390 = vmatmul.f32.gmra.mxu0 %v329
      %v391 = vpop.f32.mrf.mxu0
      %v392 = vadd.f32 %v265, %v391
      %393 = vmatmul.f32.gmra.mxu0 %v332
      %v394 = vpop.f32.mrf.mxu0
      %v395 = vadd.f32 %v270, %v394
      %396 = vmatmul.f32.gmra.mxu0 %v335
      %v397 = vpop.f32.mrf.mxu0
      %v398 = vadd.f32 %v275, %v397
      %399 = vmatmul.f32.gmra.mxu0 %v338
      %v400 = vpop.f32.mrf.mxu0
      %v401 = vadd.f32 %v280, %v400
      %402 = vmatmul.f32.gmra.mxu0 %v341
      %v403 = vpop.f32.mrf.mxu0
      %v404 = vadd.f32 %v285, %v403
      %405 = vmatmul.f32.gmra.mxu0 %v344
      %v406 = vpop.f32.mrf.mxu0
      %v407 = vadd.f32 %v290, %v406
      %408 = vmatmul.f32.gmra.mxu0 %v347
      %v409 = vpop.f32.mrf.mxu0
      %v410 = vadd.f32 %v295, %v409
      %411 = vmatmul.f32.gmra.mxu0 %v350
      %v412 = vpop.f32.mrf.mxu0
      %v413 = vadd.f32 %v300, %v412
      %414 = vmatmul.f32.gmra.mxu0 %v353
      %v415 = vpop.f32.mrf.mxu0
      %v416 = vadd.f32 %v305, %v415
      %417 = vmatmul.f32.gmra.mxu0 %v356
      %v418 = vpop.f32.mrf.mxu0
      %v419 = vadd.f32 %v310, %v418
      %420 = vmatmul.f32.gmra.mxu0 %v359
      %v421 = vpop.f32.mrf.mxu0
      %v422 = vadd.f32 %v315, %v421
      %423 = vmatmul.f32.gmra.mxu0 %v362
      %v424 = vpop.f32.mrf.mxu0
      %v425 = vadd.f32 %v320, %v424
      %426 = vmatmul.f32.gmra.mxu0 %v365
      %v427 = vpop.f32.mrf.mxu0
      %v428 = vadd.f32 %v325, %v427
      %429 = vdwg.mxu0
      %430 = vmatpush.msra.mxu0 0.0
      %431 = vmatpush.msra.mxu0 0.0
      %432 = vmatpush.msra.mxu0 0.0
      %433 = vmatpush.msra.mxu0 %v372
      %434 = vmatpush.msra.mxu0 %v233
      %435 = vmatpush.msra.mxu0 %v231
      %436 = vmatpush.msra.mxu0 %v229
      %437 = vmatpush.msra.mxu0 %v227
      %438 = vmatpush.msra.mxu0 %v225
      %439 = vmatpush.msra.mxu0 %v223
      %440 = vmatpush.msra.mxu0 %v221
      %441 = vmatpush.msra.mxu0 %v219
      %442 = vmatpush.msra.mxu0 %v217
      %443 = vmatpush.msra.mxu0 %v215
      %444 = vmatpush.msra.mxu0 %v213
      %445 = vmatpush.msra.mxu0 %v211
      %446 = vmatmul.f32.gmra.mxu0 %v329
      %v447 = vpop.f32.mrf.mxu0
      %v448 = vadd.f32 %v265, %v447
      %449 = vmatmul.f32.gmra.mxu0 %v332
      %v450 = vpop.f32.mrf.mxu0
      %v451 = vadd.f32 %v270, %v450
      %452 = vmatmul.f32.gmra.mxu0 %v335
      %v453 = vpop.f32.mrf.mxu0
      %v454 = vadd.f32 %v275, %v453
      %455 = vmatmul.f32.gmra.mxu0 %v338
      %v456 = vpop.f32.mrf.mxu0
      %v457 = vadd.f32 %v280, %v456
      %458 = vmatmul.f32.gmra.mxu0 %v341
      %v459 = vpop.f32.mrf.mxu0
      %v460 = vadd.f32 %v285, %v459
      %461 = vmatmul.f32.gmra.mxu0 %v344
      %v462 = vpop.f32.mrf.mxu0
      %v463 = vadd.f32 %v290, %v462
      %464 = vmatmul.f32.gmra.mxu0 %v347
      %v465 = vpop.f32.mrf.mxu0
      %v466 = vadd.f32 %v295, %v465
      %467 = vmatmul.f32.gmra.mxu0 %v350
      %v468 = vpop.f32.mrf.mxu0
      %v469 = vadd.f32 %v300, %v468
      %470 = vmatmul.f32.gmra.mxu0 %v353
      %v471 = vpop.f32.mrf.mxu0
      %v472 = vadd.f32 %v305, %v471
      %473 = vmatmul.f32.gmra.mxu0 %v356
      %v474 = vpop.f32.mrf.mxu0
      %v475 = vadd.f32 %v310, %v474
      %476 = vmatmul.f32.gmra.mxu0 %v359
      %v477 = vpop.f32.mrf.mxu0
      %v478 = vadd.f32 %v315, %v477
      %479 = vmatmul.f32.gmra.mxu0 %v362
      %v480 = vpop.f32.mrf.mxu0
      %v481 = vadd.f32 %v320, %v480
      %482 = vmatmul.f32.gmra.mxu0 %v365
      %v483 = vpop.f32.mrf.mxu0
      %v484 = vadd.f32 %v325, %v483
      %485 = vdwg.mxu0
      %v486 = vmul.f32 %v392, %v392
      %v487 = vmul.f32 %v448, %v448
      %v488 = vmul.f32 %v395, %v395
      %v489 = vmul.f32 %v451, %v451
      %v490 = vmul.f32 %v398, %v398
      %v491 = vmul.f32 %v454, %v454
      %v492 = vmul.f32 %v401, %v401
      %v493 = vmul.f32 %v457, %v457
      %v494 = vmul.f32 %v404, %v404
      %v495 = vmul.f32 %v460, %v460
      %v496 = vmul.f32 %v407, %v407
      %v497 = vmul.f32 %v463, %v463
      %v498 = vmul.f32 %v410, %v410
      %v499 = vmul.f32 %v466, %v466
      %v500 = vmul.f32 %v413, %v413
      %v501 = vmul.f32 %v469, %v469
      %v502 = vmul.f32 %v416, %v416
      %v503 = vmul.f32 %v472, %v472
      %v504 = vmul.f32 %v419, %v419
      %v505 = vmul.f32 %v475, %v475
      %v506 = vmul.f32 %v422, %v422
      %v507 = vmul.f32 %v478, %v478
      %v508 = vmul.f32 %v425, %v425
      %v509 = vmul.f32 %v481, %v481
      %v510 = vmul.f32 %v428, %v428
      %v511 = vmul.f32 %v484, %v484
      %v512 = vmul.f32 %v486, %v392
      %v513 = vmul.f32 %v487, %v448
      %v514 = vmul.f32 %v488, %v395
      %v515 = vmul.f32 %v489, %v451
      %v516 = vmul.f32 %v490, %v398
      %v517 = vmul.f32 %v491, %v454
      %v518 = vmul.f32 %v492, %v401
      %v519 = vmul.f32 %v493, %v457
      %v520 = vmul.f32 %v494, %v404
      %v521 = vmul.f32 %v495, %v460
      %v522 = vmul.f32 %v496, %v407
      %v523 = vmul.f32 %v497, %v463
      %v524 = vmul.f32 %v498, %v410
      %v525 = vmul.f32 %v499, %v466
      %v526 = vmul.f32 %v500, %v413
      %v527 = vmul.f32 %v501, %v469
      %v528 = vmul.f32 %v502, %v416
      %v529 = vmul.f32 %v503, %v472
      %v530 = vmul.f32 %v504, %v419
      %v531 = vmul.f32 %v505, %v475
      %v532 = vmul.f32 %v506, %v422
      %v533 = vmul.f32 %v507, %v478
      %v534 = vmul.f32 %v508, %v425
      %v535 = vmul.f32 %v509, %v481
      %v536 = vmul.f32 %v510, %v428
      %v537 = vmul.f32 %v511, %v484
      %v538 = vmul.f32 %v512, 0.044715
      %v539 = vmul.f32 %v513, 0.044715
      %v540 = vmul.f32 %v514, 0.044715
      %v541 = vmul.f32 %v515, 0.044715
      %v542 = vmul.f32 %v516, 0.044715
      %v543 = vmul.f32 %v517, 0.044715
      %v544 = vmul.f32 %v518, 0.044715
      %v545 = vmul.f32 %v519, 0.044715
      %v546 = vmul.f32 %v520, 0.044715
      %v547 = vmul.f32 %v521, 0.044715
      %v548 = vmul.f32 %v522, 0.044715
      %v549 = vmul.f32 %v523, 0.044715
      %v550 = vmul.f32 %v524, 0.044715
      %v551 = vmul.f32 %v525, 0.044715
      %v552 = vmul.f32 %v526, 0.044715
      %v553 = vmul.f32 %v527, 0.044715
      %v554 = vmul.f32 %v528, 0.044715
      %v555 = vmul.f32 %v529, 0.044715
      %v556 = vmul.f32 %v530, 0.044715
      %v557 = vmul.f32 %v531, 0.044715
      %v558 = vmul.f32 %v532, 0.044715
      %v559 = vmul.f32 %v533, 0.044715
      %v560 = vmul.f32 %v534, 0.044715
      %v561 = vmul.f32 %v535, 0.044715
      %v562 = vmul.f32 %v536, 0.044715
      %v563 = vmul.f32 %v537, 0.044715
      %v564 = vadd.f32 %v392, %v538
      %v565 = vadd.f32 %v448, %v539
      %v566 = vadd.f32 %v395, %v540
      %v567 = vadd.f32 %v451, %v541
      %v568 = vadd.f32 %v398, %v542
      %v569 = vadd.f32 %v454, %v543
      %v570 = vadd.f32 %v401, %v544
      %v571 = vadd.f32 %v457, %v545
      %v572 = vadd.f32 %v404, %v546
      %v573 = vadd.f32 %v460, %v547
      %v574 = vadd.f32 %v407, %v548
      %v575 = vadd.f32 %v463, %v549
      %v576 = vadd.f32 %v410, %v550
      %v577 = vadd.f32 %v466, %v551
      %v578 = vadd.f32 %v413, %v552
      %v579 = vadd.f32 %v469, %v553
      %v580 = vadd.f32 %v416, %v554
      %v581 = vadd.f32 %v472, %v555
      %v582 = vadd.f32 %v419, %v556
      %v583 = vadd.f32 %v475, %v557
      %v584 = vadd.f32 %v422, %v558
      %v585 = vadd.f32 %v478, %v559
      %v586 = vadd.f32 %v425, %v560
      %v587 = vadd.f32 %v481, %v561
      %v588 = vadd.f32 %v428, %v562
      %v589 = vadd.f32 %v484, %v563
      %v590 = vmul.f32 %v564, 0.7978846
      %v591 = vmul.f32 %v565, 0.7978846
      %v592 = vmul.f32 %v566, 0.7978846
      %v593 = vmul.f32 %v567, 0.7978846
      %v594 = vmul.f32 %v568, 0.7978846
      %v595 = vmul.f32 %v569, 0.7978846
      %v596 = vmul.f32 %v570, 0.7978846
      %v597 = vmul.f32 %v571, 0.7978846
      %v598 = vmul.f32 %v572, 0.7978846
      %v599 = vmul.f32 %v573, 0.7978846
      %v600 = vmul.f32 %v574, 0.7978846
      %v601 = vmul.f32 %v575, 0.7978846
      %v602 = vmul.f32 %v576, 0.7978846
      %v603 = vmul.f32 %v577, 0.7978846
      %v604 = vmul.f32 %v578, 0.7978846
      %v605 = vmul.f32 %v579, 0.7978846
      %v606 = vmul.f32 %v580, 0.7978846
      %v607 = vmul.f32 %v581, 0.7978846
      %v608 = vmul.f32 %v582, 0.7978846
      %v609 = vmul.f32 %v583, 0.7978846
      %v610 = vmul.f32 %v584, 0.7978846
      %v611 = vmul.f32 %v585, 0.7978846
      %v612 = vmul.f32 %v586, 0.7978846
      %v613 = vmul.f32 %v587, 0.7978846
      %v614 = vmul.f32 %v588, 0.7978846
      %v615 = vmul.f32 %v589, 0.7978846
      %v616 = vtanh.pop %v590
      %v617 = vtanh.pop %v591
      %v618 = vtanh.pop %v592
      %v619 = vtanh.pop %v593
      %v620 = vtanh.pop %v594
      %v621 = vtanh.pop %v595
      %v622 = vtanh.pop %v596
      %v623 = vtanh.pop %v597
      %v624 = vtanh.pop %v598
      %v625 = vtanh.pop %v599
      %v626 = vtanh.pop %v600
      %v627 = vtanh.pop %v601
      %v628 = vtanh.pop %v602
      %v629 = vtanh.pop %v603
      %v630 = vtanh.pop %v604
      %v631 = vtanh.pop %v605
      %v632 = vtanh.pop %v606
      %v633 = vtanh.pop %v607
      %v634 = vtanh.pop %v608
      %v635 = vtanh.pop %v609
      %v636 = vtanh.pop %v610
      %v637 = vtanh.pop %v611
      %v638 = vtanh.pop %v612
      %v639 = vtanh.pop %v613
      %v640 = vtanh.pop %v614
      %v641 = vtanh.pop %v615
      %v642 = vmul.f32 %v616, 0.5
      %v643 = vmul.f32 %v617, 0.5
      %v644 = vmul.f32 %v618, 0.5
      %v645 = vmul.f32 %v619, 0.5
      %v646 = vmul.f32 %v620, 0.5
      %v647 = vmul.f32 %v621, 0.5
      %v648 = vmul.f32 %v622, 0.5
      %v649 = vmul.f32 %v623, 0.5
      %v650 = vmul.f32 %v624, 0.5
      %v651 = vmul.f32 %v625, 0.5
      %v652 = vmul.f32 %v626, 0.5
      %v653 = vmul.f32 %v627, 0.5
      %v654 = vmul.f32 %v628, 0.5
      %v655 = vmul.f32 %v629, 0.5
      %v656 = vmul.f32 %v630, 0.5
      %v657 = vmul.f32 %v631, 0.5
      %v658 = vmul.f32 %v632, 0.5
      %v659 = vmul.f32 %v633, 0.5
      %v660 = vmul.f32 %v634, 0.5
      %v661 = vmul.f32 %v635, 0.5
      %v662 = vmul.f32 %v636, 0.5
      %v663 = vmul.f32 %v637, 0.5
      %v664 = vmul.f32 %v638, 0.5
      %v665 = vmul.f32 %v639, 0.5
      %v666 = vmul.f32 %v640, 0.5
      %v667 = vmul.f32 %v641, 0.5
      %v668 = vadd.f32 %v642, 1.5
      %v669 = vadd.f32 %v643, 1.5
      %v670 = vadd.f32 %v644, 1.5
      %v671 = vadd.f32 %v645, 1.5
      %v672 = vadd.f32 %v646, 1.5
      %v673 = vadd.f32 %v647, 1.5
      %v674 = vadd.f32 %v648, 1.5
      %v675 = vadd.f32 %v649, 1.5
      %v676 = vadd.f32 %v650, 1.5
      %v677 = vadd.f32 %v651, 1.5
      %v678 = vadd.f32 %v652, 1.5
      %v679 = vadd.f32 %v653, 1.5
      %v680 = vadd.f32 %v654, 1.5
      %v681 = vadd.f32 %v655, 1.5
      %v682 = vadd.f32 %v656, 1.5
      %v683 = vadd.f32 %v657, 1.5
      %v684 = vadd.f32 %v658, 1.5
      %v685 = vadd.f32 %v659, 1.5
      %v686 = vadd.f32 %v660, 1.5
      %v687 = vadd.f32 %v661, 1.5
      %v688 = vadd.f32 %v662, 1.5
      %v689 = vadd.f32 %v663, 1.5
      %v690 = vadd.f32 %v664, 1.5
      %v691 = vadd.f32 %v665, 1.5
      %v692 = vadd.f32 %v666, 1.5
      %v693 = vadd.f32 %v667, 1.5
      %v694 = vmul.f32 %v392, %v668
      %v695 = vmul.f32 %v448, %v669
      %v696 = vmul.f32 %v395, %v670
      %v697 = vmul.f32 %v451, %v671
      %v698 = vmul.f32 %v398, %v672
      %v699 = vmul.f32 %v454, %v673
      %v700 = vmul.f32 %v401, %v674
      %v701 = vmul.f32 %v457, %v675
      %v702 = vmul.f32 %v404, %v676
      %v703 = vmul.f32 %v460, %v677
      %v704 = vmul.f32 %v407, %v678
      %v705 = vmul.f32 %v463, %v679
      %v706 = vmul.f32 %v410, %v680
      %v707 = vmul.f32 %v466, %v681
      %v708 = vmul.f32 %v413, %v682
      %v709 = vmul.f32 %v469, %v683
      %v710 = vmul.f32 %v416, %v684
      %v711 = vmul.f32 %v472, %v685
      %v712 = vmul.f32 %v419, %v686
      %v713 = vmul.f32 %v475, %v687
      %v714 = vmul.f32 %v422, %v688
      %v715 = vmul.f32 %v478, %v689
      %v716 = vmul.f32 %v425, %v690
      %v717 = vmul.f32 %v481, %v691
      %v718 = vmul.f32 %v428, %v692
      %v719 = vmul.f32 %v484, %v693
      %720 = vst [vmem:[%s208] sm:$0xff] %v694
      %721 = vst [vmem:[%s208 + $0x8] sm:$0xff] %v695
      %722 = vst [vmem:[%s208 + $0x10] sm:$0xff] %v696
      %723 = vst [vmem:[%s208 + $0x18] sm:$0xff] %v697
      %724 = vst [vmem:[%s208 + $0x20] sm:$0xff] %v698
      %725 = vst [vmem:[%s208 + $0x28] sm:$0xff] %v699
      %726 = vst [vmem:[%s208 + $0x30] sm:$0xff] %v700
      %727 = vst [vmem:[%s208 + $0x38] sm:$0xff] %v701
      %728 = vst [vmem:[%s208 + $0x40] sm:$0xff] %v702
      %729 = vst [vmem:[%s208 + $0x48] sm:$0xff] %v703
      %730 = vst [vmem:[%s208 + $0x50] sm:$0xff] %v704
      %731 = vst [vmem:[%s208 + $0x58] sm:$0xff] %v705
      %732 = vst [vmem:[%s208 + $0x60] sm:$0xff] %v706
      %733 = vst [vmem:[%s208 + $0x68] sm:$0xff] %v707
      %734 = vst [vmem:[%s208 + $0x70] sm:$0xff] %v708
      %735 = vst [vmem:[%s208 + $0x78] sm:$0xff] %v709
      %736 = vst [vmem:[%s208 + $0x80] sm:$0xff] %v710
      %737 = vst [vmem:[%s208 + $0x88] sm:$0xff] %v711
      %738 = vst [vmem:[%s208 + $0x90] sm:$0xff] %v712
      %739 = vst [vmem:[%s208 + $0x98] sm:$0xff] %v713
      %740 = vst [vmem:[%s208 + $0xa0] sm:$0xff] %v714
      %741 = vst [vmem:[%s208 + $0xa8] sm:$0xff] %v715
      %742 = vst [vmem:[%s208 + $0xb0] sm:$0xff] %v716
      %743 = vst [vmem:[%s208 + $0xb8] sm:$0xff] %v717
      %744 = vst [vmem:[%s208 + $0xc0] sm:$0xf] %v718
      %745 = vst [vmem:[%s208 + $0xc8] sm:$0xf] %v719
      %s746 = smul.u32 2, %s19
      %p747 = scmp.lt.s32.totalorder %s18, 1
      %s748 = scalar_select %p747, %s18, 1
      %p749 = scmp.lt.s32.totalorder %s746, 1
      %s750 = scalar_select %p749, %s746, 1
      %s751 = smul.addr %s748, 26
      %s752 = sadd.s32 %s750, %s751
      %s753 = smul.addr %s752, 8
      %s754 = scalar_lea.vmem %s3, %s753
      // Predicated region
      $region33: #{tpu_custom_call.1} parent=31 // pred_check
        %p755 = pneg %p116
      $region34: #{tpu_custom_call.1} parent=31 // pred_check_branch
        %757 = sbr.rel (%p755) target = $region36
      $region35: #{tpu_custom_call.1} parent=31 // pred_region
        %s758 = smul.u32 2, %s19
      $region36: #{tpu_custom_call.1} parent=31 // pred_fallthru
        _
    $region32: #{tpu_custom_call.1} parent=5 // pred_fallthru
      _
    %p759 = scmp.le.s32.totalorder 2, %s9
    // Predicated region
    $region37: #{tpu_custom_call.1} parent=5 // pred_check
      %p760 = pneg %p759
    $region38: #{tpu_custom_call.1} parent=5 // pred_check_branch
      %762 = sbr.rel (%p760) target = $region40
    $region39: #{tpu_custom_call.1} parent=5 // pred_region
      %s763 = ssub.s32 %s9, 2
      // Predicated region
      $region41: #{tpu_custom_call.1} parent=39 // pred_check
        %p764 = pneg %p122
      $region42: #{tpu_custom_call.1} parent=39 // pred_check_branch
        %766 = sbr.rel (%p764) target = $region44
      $region43: #{tpu_custom_call.1} parent=39 // pred_region
        %s767 = smul.u32 2, %s21
        %p768 = scmp.lt.s32.totalorder %s20, 1
        %s769 = scalar_select %p768, %s20, 1
        %p770 = scmp.lt.s32.totalorder %s767, 1
        %s771 = scalar_select %p770, %s767, 1
        %s772 = smul.addr %s769, 26
        %s773 = sadd.s32 %s771, %s772
        %s774 = smul.addr %s773, 8
        %s775 = scalar_lea.vmem %s3, %s774
      $region44: #{tpu_custom_call.1} parent=39 // pred_fallthru
        _
    $region40: #{tpu_custom_call.1} parent=5 // pred_fallthru
      _
  $region6: #{tpu_custom_call.1} parent=0 // loop_footer
    %s13 = sadd.s32 1, %s9
  $region7: #{tpu_custom_call.1} parent=0 // loop_footer_branch
    %8 = sbr.rel target = $region3
  $region8: #{tpu_custom_call.1} parent=0 // loop_exit
    _

</llo_original>
